<compile_context>
chip_gen: v6e
topology: v6e:2x2x1
jax: 0.10.0
libtpu: 0.0.40
codegen_flags: <defaults>
</compile_context>

<pallas_src>
import functools
import math

import jax
import jax.numpy as jnp
from jax.experimental import pallas as pl
from jax.experimental.pallas import tpu as pltpu


def _round_up(x: int, m: int) -> int:
    return ((x + m - 1) // m) * m


def _attention_dot_kernel(q_ref, r_ref, o_ref, *, use_tanh: bool, C: float):
    # q_ref: (TB, 1, D)   r_ref: (TB, L, D)   o_ref: (TB, L)
    q = q_ref[...].astype(jnp.float32)          # (TB, 1, D)
    r = r_ref[...].astype(jnp.float32)          # (TB, L, D)
    # logits[b, l] = sum_d r[b, l, d] * q[b, 0, d]
    # (TB, 1, D) sublane-broadcasts across L; accumulate in f32.
    logits = jnp.sum(r * q, axis=-1)            # (TB, L)
    if use_tanh:
        logits = C * jnp.tanh(logits)
    o_ref[...] = logits.astype(o_ref.dtype)


def _choose_batch_tile(B: int, L: int, D: int, itemsize: int,
                       vmem_budget_bytes: int = 8 * 1024 * 1024) -> int:
    """Largest TB (multiple of 8) whose double-buffered tiles fit the budget."""
    d_pad = _round_up(D, 128)
    l_pad8 = _round_up(L, 8)
    l_pad128 = _round_up(L, 128)
    # ref tile + sublane-padded query tile + output tile, x2 for double buffering.
    per_batch = 2 * ((l_pad8 * d_pad + 8 * d_pad) * itemsize + l_pad128 * 4)
    tb = max(1, vmem_budget_bytes // per_batch)
    tb = min(tb, _round_up(B, 8))        # no point padding batch beyond need
    tb = max(8, (tb // 8) * 8)           # sublane-aligned
    return tb


def attention_dot(query: jax.Array, ref: jax.Array,
                  use_tanh: bool = False, C: float = 10.0,
                  *, batch_tile: int | None = None) -> jax.Array:
    """Equivalent of Attention(use_tanh, C, name='Dot').forward(query, ref).

    query: (B, D), ref: (B, L, D) -> logits: (B, L)
    """
    B, D = query.shape
    Br, L, Dr = ref.shape
    assert B == Br and D == Dr, "query/ref shape mismatch"

    itemsize = jnp.dtype(ref.dtype).itemsize
    if batch_tile is None:
        tb = _choose_batch_tile(B, L, D, itemsize)
    else:
        tb = max(8, _round_up(int(batch_tile), 8))

    b_pad = _round_up(B, tb)
    if b_pad != B:
        query = jnp.pad(query, ((0, b_pad - B), (0, 0)))
        ref = jnp.pad(ref, ((0, b_pad - B), (0, 0), (0, 0)))

    # Present query as (B, 1, D) so the kernel broadcast needs no in-kernel reshape.
    q3 = query.reshape(b_pad, 1, D)

    kernel = functools.partial(_attention_dot_kernel,
                               use_tanh=use_tanh, C=float(C))

    out = pl.pallas_call(
        kernel,
        out_shape=jax.ShapeDtypeStruct((b_pad, L), query.dtype),
        grid_spec=pltpu.PrefetchScalarGridSpec(
            num_scalar_prefetch=0,
            grid=(b_pad // tb,),
            in_specs=[
                pl.BlockSpec((tb, 1, D), lambda b: (b, 0, 0)),   # query tile
                pl.BlockSpec((tb, L, D), lambda b: (b, 0, 0)),   # ref tile
            ],
            out_specs=pl.BlockSpec((tb, L), lambda b: (b, 0)),
        ),
        compiler_params=pltpu.CompilerParams(
            dimension_semantics=("parallel",)),
    )(q3, ref)

    return out[:B]


def attention_dot_reference(query, ref, use_tanh=False, C=10.0):
    # Pure-JAX reference mirroring the PyTorch forward.
    logits = jnp.einsum("bld,bd->bl", ref, query)
    if use_tanh:
        logits = C * jnp.tanh(logits)
    return logits


if __name__ == "__main__":
    key = jax.random.PRNGKey(0)
    kq, kr = jax.random.split(key)

    # Small shapes matching the module's forward: batch=2, seq=8, hidden=32.
    B, L, D = 2, 8, 32
    query = jax.random.normal(kq, (B, D), dtype=jnp.float32)
    ref = jax.random.normal(kr, (B, L, D), dtype=jnp.float32)

    # Default config: use_tanh=False.
    out = jax.block_until_ready(attention_dot(query, ref, use_tanh=False, C=10.0))
    expected = attention_dot_reference(query, ref, use_tanh=False, C=10.0)
    assert out.shape == (B, L)
    assert jnp.allclose(out, expected, atol=1e-5, rtol=1e-5)

    # use_tanh branch.
    out_t = jax.block_until_ready(attention_dot(query, ref, use_tanh=True, C=10.0))
    expected_t = attention_dot_reference(query, ref, use_tanh=True, C=10.0)
    assert jnp.allclose(out_t, expected_t, atol=1e-4, rtol=1e-4)

    # Exercise the multi-step batch-tiled grid path (padding + index maps).
    B2, L2, D2 = 32, 16, 64
    q2 = jax.random.normal(kq, (B2, D2), dtype=jnp.float32)
    r2 = jax.random.normal(kr, (B2, L2, D2), dtype=jnp.float32)
    out2 = jax.block_until_ready(
        attention_dot(q2, r2, use_tanh=True, C=10.0, batch_tile=8))
    exp2 = attention_dot_reference(q2, r2, use_tanh=True, C=10.0)
    assert out2.shape == (B2, L2)
    assert jnp.allclose(out2, exp2, atol=1e-4, rtol=1e-4)

    print("KERNEL_OK")
</pallas_src>

<mosaic_0001>
module attributes {stable_mosaic.version = 11 : i64} {
  func.func @_attention_dot_kernel(%arg0: i32, %arg1: memref<8x1x32xf32, #tpu.memory_space<vmem>>, %arg2: memref<8x8x32xf32, #tpu.memory_space<vmem>>, %arg3: memref<8x8xf32, #tpu.memory_space<vmem>>) attributes {dimension_semantics = [#tpu.dimension_semantics<parallel>], iteration_bounds = array<i64: 1>, scalar_prefetch = 0 : i64, scratch_operands = 0 : i64, tpu.core_type = #tpu.core_type<tc>, window_params = [{transform_indices = @transform_0, window_bounds = array<i64: 8, 1, 32>}, {transform_indices = @transform_1, window_bounds = array<i64: 8, 8, 32>}, {transform_indices = @transform_2, window_bounds = array<i64: 8, 8>}]} {
    %c0 = arith.constant 0 : index
    %c0_0 = arith.constant 0 : index
    %c0_1 = arith.constant 0 : index
    %0 = vector.load %arg1[%c0, %c0_0, %c0_1] : memref<8x1x32xf32, #tpu.memory_space<vmem>>, vector<8x1x32xf32>
    %c0_2 = arith.constant 0 : index
    %c0_3 = arith.constant 0 : index
    %c0_4 = arith.constant 0 : index
    %1 = vector.load %arg2[%c0_2, %c0_3, %c0_4] : memref<8x8x32xf32, #tpu.memory_space<vmem>>, vector<8x8x32xf32>
    %2 = vector.broadcast %0 : vector<8x1x32xf32> to vector<8x8x32xf32>
    %3 = arith.mulf %1, %2 : vector<8x8x32xf32>
    %cst = arith.constant dense<0.000000e+00> : vector<8x8xf32>
    %4 = vector.multi_reduction <add>, %3, %cst [2] : vector<8x8x32xf32> to vector<8x8xf32>
    %c0_5 = arith.constant 0 : index
    %c0_6 = arith.constant 0 : index
    %5 = vector.load %arg3[%c0_5, %c0_6] : memref<8x8xf32, #tpu.memory_space<vmem>>, vector<8x8xf32>
    tpu.vector_store %arg3[%c0_5, %c0_6], %4 {strides = array<i32>} : memref<8x8xf32, #tpu.memory_space<vmem>>, vector<8x8xf32>,
    return
  }
  func.func @transform_0(%arg0: i32) -> (i32, i32, i32) {
    %c0_i32 = arith.constant 0 : i32
    %c0_i32_0 = arith.constant 0 : i32
    %c0_i32_1 = arith.constant 0 : i32
    return %arg0, %c0_i32, %c0_i32_0 : i32, i32, i32
  }
  func.func @transform_1(%arg0: i32) -> (i32, i32, i32) {
    %c0_i32 = arith.constant 0 : i32
    %c0_i32_0 = arith.constant 0 : i32
    %c0_i32_1 = arith.constant 0 : i32
    return %arg0, %c0_i32, %c0_i32_0 : i32, i32, i32
  }
  func.func @transform_2(%arg0: i32) -> (i32, i32) {
    %c0_i32 = arith.constant 0 : i32
    %c0_i32_0 = arith.constant 0 : i32
    return %arg0, %c0_i32 : i32, i32
  }
}

</mosaic_0001>

<llo_original>
// kernel: tpu_custom_call.1
$region0: #{tpu_custom_call.1}
  #allocation0 [shape = 'u32[]', space=smem, size = 0x4, offset = 0x4, fixed_abs, tag = 'smem constant byte address 0x4 - core index']
  #allocation1 [shape = 'u32[144,128]{1,0:T(1,128)}', space=vmem, size = 0x12000, scoped, tag = 'internal scratch']
  %s0 = inlined_call_operand.hbm [shape: f32[8,1,32], index: 0, kind: input, shape index: {}]
  %s1 = inlined_call_operand.hbm [shape: f32[8,8,32], index: 1, kind: input, shape index: {}]
  %s2 = inlined_call_operand.hbm [shape: f32[8,8], index: 2, kind: output, shape index: {}]
  %s3 = sld [smem:[#allocation0]]
  $region26: #{tpu_custom_call.1} parent=0
    _
  %s5 = ssub.s32 1, %s3
  %s6 = scalar_select 0, %s5, %s3
  $region1: #{tpu_custom_call.1} parent=0
    #allocation2 [shape = 'u8[4096]{0}', space=vmem, size = 0x1000, scoped, tag = 'input window, operand 0, single buffered']
    #allocation3 [shape = 's32[1]{0}', space=sflag, size = 0x4, scoped, tag = 'scoped memory for tpu_custom_call.1']
    #allocation4 [shape = 's32[1]{0}', space=sflag, size = 0x4, scoped, tag = 'scoped memory for tpu_custom_call.1']
    #allocation5 [shape = 'u8[32768]{0}', space=vmem, size = 0x8000, scoped, tag = 'input window, operand 1, single buffered']
    #allocation6 [shape = 's32[1]{0}', space=sflag, size = 0x4, scoped, tag = 'scoped memory for tpu_custom_call.1']
    #allocation7 [shape = 'u8[4096]{0}', space=vmem, size = 0x1000, scoped, tag = 'output window, operand 0, single buffered']
    %7 = vsyncpa [#allocation3], 0
    %8 = vsyncpa [#allocation6], 0
    %9 = vsyncpa [#allocation4], 0
    // Predicated region
    $region2: #{tpu_custom_call.1} parent=1 // pred_check
      _
    $region3: #{tpu_custom_call.1} parent=1 // pred_check_branch
      %11 = sbr.rel (0) target = $region5
    $region4: #{tpu_custom_call.1} parent=1 // pred_region
      %s13 = ssub.s32 128, 128
      %14 = vsyncadd [#allocation3], %s13
      %s15 = sshll.u32 [#allocation2], 4
      %s16 = int_to_ptr.vmem [resolvable:$true] %s15
      %21 = dma.hbm_to_vmem [thread:$0]  %s0, 128, %s16, [#allocation3], 16, 16, 1
    $region5: #{tpu_custom_call.1} parent=1 // pred_fallthru
      _
    // Predicated region
    $region6: #{tpu_custom_call.1} parent=1 // pred_check
      _
    $region7: #{tpu_custom_call.1} parent=1 // pred_check_branch
      %23 = sbr.rel (0) target = $region9
    $region8: #{tpu_custom_call.1} parent=1 // pred_region
      %s25 = ssub.s32 1024, 1024
      %26 = vsyncadd [#allocation6], %s25
      %s27 = sshll.u32 [#allocation5], 4
      %s28 = int_to_ptr.vmem [resolvable:$true] %s27
      %33 = dma.hbm_to_vmem [thread:$0]  %s1, 1024, %s28, [#allocation6], 128, 128, 8
    $region9: #{tpu_custom_call.1} parent=1 // pred_fallthru
      _
    // Predicated region
    $region10: #{tpu_custom_call.1} parent=1 // pred_check
      _
    $region11: #{tpu_custom_call.1} parent=1 // pred_check_branch
      %35 = sbr.rel (0) target = $region13
    $region12: #{tpu_custom_call.1} parent=1 // pred_region
      %36 = dma.done [#allocation3], 128
    $region13: #{tpu_custom_call.1} parent=1 // pred_fallthru
      _
    // Predicated region
    $region14: #{tpu_custom_call.1} parent=1 // pred_check
      _
    $region15: #{tpu_custom_call.1} parent=1 // pred_check_branch
      %38 = sbr.rel (0) target = $region17
    $region16: #{tpu_custom_call.1} parent=1 // pred_region
      %39 = dma.done [#allocation6], 1024
    $region17: #{tpu_custom_call.1} parent=1 // pred_fallthru
      _
    %v40 = vld [vmem:[#allocation2] sm:$0x1]
    %v41 = vld [vmem:[#allocation2 + $0x1] sm:$0x1]
    %v42 = vld [vmem:[#allocation2 + $0x2] sm:$0x1]
    %v43 = vld [vmem:[#allocation2 + $0x3] sm:$0x1]
    %v44 = vld [vmem:[#allocation2 + $0x4] sm:$0x1]
    %v45 = vld [vmem:[#allocation2 + $0x5] sm:$0x1]
    %v46 = vld [vmem:[#allocation2 + $0x6] sm:$0x1]
    %v47 = vld [vmem:[#allocation2 + $0x7] sm:$0x1]
    %v48 = vld [vmem:[#allocation5] sm:$0xff]
    %v49 = vld [vmem:[#allocation5 + $0x8] sm:$0xff]
    %v50 = vld [vmem:[#allocation5 + $0x10] sm:$0xff]
    %v51 = vld [vmem:[#allocation5 + $0x18] sm:$0xff]
    %v52 = vld [vmem:[#allocation5 + $0x20] sm:$0xff]
    %v53 = vld [vmem:[#allocation5 + $0x28] sm:$0xff]
    %v54 = vld [vmem:[#allocation5 + $0x30] sm:$0xff]
    %v55 = vld [vmem:[#allocation5 + $0x38] sm:$0xff]
    %v64 = vlaneseq
    %v65 = vshrl.u32 %v64, 7
    %v66 = vsub.s32 0, %v65
    %v67 = vrot.slane %v40, %v66
    %v68 = vlaneseq
    %v69 = vshrl.u32 %v68, 7
    %v70 = vsub.s32 0, %v69
    %v71 = vrot.slane %v41, %v70
    %v72 = vlaneseq
    %v73 = vshrl.u32 %v72, 7
    %v74 = vsub.s32 0, %v73
    %v75 = vrot.slane %v42, %v74
    %v76 = vlaneseq
    %v77 = vshrl.u32 %v76, 7
    %v78 = vsub.s32 0, %v77
    %v79 = vrot.slane %v43, %v78
    %v80 = vlaneseq
    %v81 = vshrl.u32 %v80, 7
    %v82 = vsub.s32 0, %v81
    %v83 = vrot.slane %v44, %v82
    %v84 = vlaneseq
    %v85 = vshrl.u32 %v84, 7
    %v86 = vsub.s32 0, %v85
    %v87 = vrot.slane %v45, %v86
    %v88 = vlaneseq
    %v89 = vshrl.u32 %v88, 7
    %v90 = vsub.s32 0, %v89
    %v91 = vrot.slane %v46, %v90
    %v92 = vlaneseq
    %v93 = vshrl.u32 %v92, 7
    %v94 = vsub.s32 0, %v93
    %v95 = vrot.slane %v47, %v94
    %v104 = vmul.f32 %v48, %v67
    %v105 = vmul.f32 %v49, %v71
    %v106 = vmul.f32 %v50, %v75
    %v107 = vmul.f32 %v51, %v79
    %v108 = vmul.f32 %v52, %v83
    %v109 = vmul.f32 %v53, %v87
    %v110 = vmul.f32 %v54, %v91
    %v111 = vmul.f32 %v55, %v95
    %vm112 = vcmask 261120
    %v113 = vsel %vm112, %v104, 0.0
    %114 = vadd.xlane.f32.xlu0 %v113
    %v115 = vpop.xlane.xlu0 %114
    %v116 = vsel %vm112, %v105, 0.0
    %117 = vadd.xlane.f32.xlu0 %v116
    %v118 = vpop.xlane.xlu0 %117
    %v119 = vsel %vm112, %v106, 0.0
    %120 = vadd.xlane.f32.xlu0 %v119
    %v121 = vpop.xlane.xlu0 %120
    %v122 = vsel %vm112, %v107, 0.0
    %123 = vadd.xlane.f32.xlu0 %v122
    %v124 = vpop.xlane.xlu0 %123
    %v125 = vsel %vm112, %v108, 0.0
    %126 = vadd.xlane.f32.xlu0 %v125
    %v127 = vpop.xlane.xlu0 %126
    %v128 = vsel %vm112, %v109, 0.0
    %129 = vadd.xlane.f32.xlu0 %v128
    %v130 = vpop.xlane.xlu0 %129
    %v131 = vsel %vm112, %v110, 0.0
    %132 = vadd.xlane.f32.xlu0 %v131
    %v133 = vpop.xlane.xlu0 %132
    %v134 = vsel %vm112, %v111, 0.0
    %135 = vadd.xlane.f32.xlu0 %v134
    %v136 = vpop.xlane.xlu0 %135
    %v145 = vlaneseq
    %v146 = vand.u32 %v145, 127
    %v147 = vlaneseq
    %v148 = vshrl.u32 %v147, 7
    %v149 = vsub.s32 %v146, %v148
    %v150 = vrot.slane %v115, %v149
    %v151 = vlaneseq
    %v152 = vshrl.u32 %v151, 7
    %v153 = vsub.s32 %v146, %v152
    %v154 = vrot.slane %v118, %v153
    %v155 = vlaneseq
    %v156 = vshrl.u32 %v155, 7
    %v157 = vsub.s32 %v146, %v156
    %v158 = vrot.slane %v121, %v157
    %v159 = vlaneseq
    %v160 = vshrl.u32 %v159, 7
    %v161 = vsub.s32 %v146, %v160
    %v162 = vrot.slane %v124, %v161
    %v163 = vlaneseq
    %v164 = vshrl.u32 %v163, 7
    %v165 = vsub.s32 %v146, %v164
    %v166 = vrot.slane %v127, %v165
    %v167 = vlaneseq
    %v168 = vshrl.u32 %v167, 7
    %v169 = vsub.s32 %v146, %v168
    %v170 = vrot.slane %v130, %v169
    %v171 = vlaneseq
    %v172 = vshrl.u32 %v171, 7
    %v173 = vsub.s32 %v146, %v172
    %v174 = vrot.slane %v133, %v173
    %v175 = vlaneseq
    %v176 = vshrl.u32 %v175, 7
    %v177 = vsub.s32 %v146, %v176
    %v178 = vrot.slane %v136, %v177
    %vm179 = vcmask 1041409
    %v180 = vsel %vm179, %v154, %v150
    %vm181 = vcmask 1042434
    %v182 = vsel %vm181, %v158, %v180
    %vm183 = vcmask 1043459
    %v184 = vsel %vm183, %v162, %v182
    %vm185 = vcmask 1044484
    %v186 = vsel %vm185, %v166, %v184
    %vm187 = vcmask 1045509
    %v188 = vsel %vm187, %v170, %v186
    %vm189 = vcmask 1046534
    %v190 = vsel %vm189, %v174, %v188
    %vm191 = vcmask 1047559
    %v192 = vsel %vm191, %v178, %v190
    %vm194 = vcmask 64512
    %195 = vst.msk [vmem:[#allocation7] sm:$0xff] %vm194, %v192
    // Predicated region
    $region18: #{tpu_custom_call.1} parent=1 // pred_check
      _
    $region19: #{tpu_custom_call.1} parent=1 // pred_check_branch
      %197 = sbr.rel (0) target = $region21
    $region20: #{tpu_custom_call.1} parent=1 // pred_region
      %s199 = ssub.s32 128, 128
      %200 = vsyncadd [#allocation4], %s199
      %s202 = sshll.u32 [#allocation7], 4
      %s203 = int_to_ptr.vmem [resolvable:$true] %s202
      %205 = dma.vmem_to_hbm [thread:$0]  %s203, 128, %s2, [#allocation4]
    $region21: #{tpu_custom_call.1} parent=1 // pred_fallthru
      _
    // Predicated region
    $region22: #{tpu_custom_call.1} parent=1 // pred_check
      _
    $region23: #{tpu_custom_call.1} parent=1 // pred_check_branch
      %207 = sbr.rel (0) target = $region25
    $region24: #{tpu_custom_call.1} parent=1 // pred_region
      %208 = dma.done [#allocation4], 128
    $region25: #{tpu_custom_call.1} parent=1 // pred_fallthru
      _
    %209 = vsyncpa [#allocation3], 1
    %210 = vsyncpa [#allocation6], 1
    %211 = vsyncpa [#allocation4], 1

</llo_original>
